<compile_context>
chip_gen: v7x
topology: tpu7x:2x2x1
jax: 0.10.0
libtpu: 0.0.40
codegen_flags: <defaults>
</compile_context>

<pallas_src>
import jax
import jax.numpy as jnp
from jax import lax
from jax.experimental import pallas as pl
from jax.experimental.pallas import tpu as pltpu


def _round_up(x, m):
    return ((x + m - 1) // m) * m


# --------------------------------------------------------------------------------------
# projection kernel: xw = x @ W   (used when we reorder the two matmuls)
# --------------------------------------------------------------------------------------
def _project_kernel(x_ref, w_ref, o_ref):
    # x_ref: (1, T, Din), w_ref: (Din, Dp), o_ref: (1, T, Dp)
    o_ref[0] = jnp.dot(x_ref[0], w_ref[...],
                       preferred_element_type=jnp.float32).astype(o_ref.dtype)


def _project(x, w, *, tile, vmem_limit_bytes, out_dtype):
    B, Np, Din = x.shape
    Dp = w.shape[1]
    return pl.pallas_call(
        _project_kernel,
        out_shape=jax.ShapeDtypeStruct((B, Np, Dp), out_dtype),
        grid_spec=pltpu.PrefetchScalarGridSpec(
            num_scalar_prefetch=0,
            grid=(B, Np // tile),
            in_specs=[
                pl.BlockSpec((1, tile, Din), lambda b, i: (b, i, 0)),
                pl.BlockSpec((Din, Dp), lambda b, i: (0, 0)),     # resident W
            ],
            out_specs=pl.BlockSpec((1, tile, Dp), lambda b, i: (b, i, 0)),
        ),
        compiler_params=pltpu.CompilerParams(
            dimension_semantics=("parallel", "parallel"),
            vmem_limit_bytes=vmem_limit_bytes),
    )(x, w)


# --------------------------------------------------------------------------------------
# aggregation kernel: acc += adj_tile @ feat_tile   (+ epilogue at the last k tile)
# --------------------------------------------------------------------------------------
def _make_agg_kernel(*, add_self, normalize, use_bias, apply_w):
    def kernel(*refs):
        adj_ref, fk_ref = refs[0], refs[1]
        pos = 2
        fi_ref = None
        if add_self:
            fi_ref = refs[pos]; pos += 1
        w_ref = None
        if apply_w:
            w_ref = refs[pos]; pos += 1
        b_ref = None
        if use_bias:
            b_ref = refs[pos]; pos += 1
        o_ref, acc_ref = refs[pos], refs[pos + 1]

        k = pl.program_id(2)

        @pl.when(k == 0)
        def _():
            acc_ref[...] = jnp.zeros_like(acc_ref)

        # MXU: (T, T) @ (T, F), accumulated in f32 scratch across the k grid axis.
        acc_ref[...] += jnp.dot(adj_ref[0], fk_ref[0],
                                preferred_element_type=jnp.float32)

        @pl.when(k == pl.num_programs(2) - 1)
        def _():
            y = acc_ref[...]
            if add_self:
                y = y + fi_ref[0].astype(jnp.float32)
            if apply_w:
                # NOTE: if W is bf16 (compute_dtype set) this downcast of the f32
                # accumulator is the explicit precision tradeoff of bf16 mode.
                y = jnp.dot(y.astype(w_ref.dtype), w_ref[...],
                            preferred_element_type=jnp.float32)
            if use_bias:
                y = y + b_ref[...].astype(jnp.float32)
            if normalize:
                # F.normalize(p=2, dim=2, eps=1e-12)  ==  y / max(||y||, 1e-12)
                ss = jnp.sum(y * y, axis=-1, keepdims=True)
                y = y * lax.rsqrt(jnp.maximum(ss, 1e-24))
            o_ref[0] = y.astype(o_ref.dtype)

    return kernel


# --------------------------------------------------------------------------------------
# wrapper
# --------------------------------------------------------------------------------------
def graph_conv(x, adj, weight, bias=None, *, add_self=False,
               normalize_embedding=False, compute_dtype=None,
               tile=512, vmem_limit_bytes=48 * 1024 * 1024):
    """Pallas implementation of GraphConv.forward.

    x: (B, N, Din), adj: (B, N, N), weight: (Din, Dout), bias: (Dout,) or None.
    compute_dtype: optional MXU input dtype (e.g. jnp.bfloat16); accumulation stays f32.
    """
    # TODO(synk): dropout (p > 0) is not fused; apply it to x outside the kernel when training.
    B, N, Din = x.shape
    Dout = weight.shape[1]
    out_dtype = x.dtype
    use_bias = bias is not None

    # lane-dense output: pad Dout to a multiple of 128 (zero columns, sliced off at the end)
    Dp = _round_up(Dout, 128)
    if Dp != Dout:
        weight = jnp.pad(weight, ((0, 0), (0, Dp - Dout)))
        if use_bias:
            bias = jnp.pad(bias, (0, Dp - Dout))

    # node-dim tiling: one square tile size T that evenly divides the (padded) N
    T = _round_up(N, 8) if N <= tile else tile
    Np = _round_up(N, T)
    if Np != N:
        x = jnp.pad(x, ((0, 0), (0, Np - N), (0, 0)))
        adj = jnp.pad(adj, ((0, 0), (0, Np - N), (0, Np - N)))

    if compute_dtype is not None:
        adj = adj.astype(compute_dtype)
        x_mm = x.astype(compute_dtype)
        w_mm = weight.astype(compute_dtype)
    else:
        x_mm, w_mm = x, weight

    # matmul reorder: aggregate over whichever of Din / Dout has the narrower lane width
    project_first = _round_up(Dout, 128) <= _round_up(Din, 128)
    if project_first:
        feat = _project(x_mm, w_mm, tile=T, vmem_limit_bytes=vmem_limit_bytes,
                        out_dtype=(compute_dtype if compute_dtype is not None else x.dtype))
        F = Dp
        apply_w = False
    else:
        feat = x_mm
        F = Din
        apply_w = True

    kernel = _make_agg_kernel(add_self=add_self, normalize=normalize_embedding,
                              use_bias=use_bias, apply_w=apply_w)

    inputs = [adj, feat]
    in_specs = [
        pl.BlockSpec((1, T, T), lambda b, i, k: (b, i, k)),     # adj tile
        pl.BlockSpec((1, T, F), lambda b, i, k: (b, k, 0)),     # feat rows (k block)
    ]
    if add_self:
        inputs.append(feat)
        in_specs.append(pl.BlockSpec((1, T, F), lambda b, i, k: (b, i, 0)))   # feat rows (i block)
    if apply_w:
        inputs.append(w_mm)
        in_specs.append(pl.BlockSpec((Din, Dp), lambda b, i, k: (0, 0)))      # resident W
    if use_bias:
        inputs.append(bias.reshape(1, Dp))
        in_specs.append(pl.BlockSpec((1, Dp), lambda b, i, k: (0, 0)))        # resident bias

    out = pl.pallas_call(
        kernel,
        out_shape=jax.ShapeDtypeStruct((B, Np, Dp), out_dtype),
        grid_spec=pltpu.PrefetchScalarGridSpec(
            num_scalar_prefetch=0,
            grid=(B, Np // T, Np // T),
            in_specs=in_specs,
            out_specs=pl.BlockSpec((1, T, Dp), lambda b, i, k: (b, i, 0)),
            scratch_shapes=[pltpu.VMEM((T, F), jnp.float32)],
        ),
        compiler_params=pltpu.CompilerParams(
            dimension_semantics=("parallel", "parallel", "arbitrary"),
            vmem_limit_bytes=vmem_limit_bytes),
    )(*inputs)

    return out[:, :N, :Dout]


if __name__ == "__main__":
    # Small deterministic example consistent with GraphConv(input_dim=32, output_dim=32)
    B, N, Din, Dout = 2, 16, 32, 32
    key = jax.random.PRNGKey(0)
    kx, kadj, kw, kb, kw2 = jax.random.split(key, 5)

    x = jax.random.normal(kx, (B, N, Din), dtype=jnp.float32)
    adj = jax.random.uniform(kadj, (B, N, N), dtype=jnp.float32)
    weight = jax.random.normal(kw, (Din, Dout), dtype=jnp.float32) * 0.1
    bias = jax.random.normal(kb, (Dout,), dtype=jnp.float32) * 0.1

    # 1) default config (project-first path)
    out = jax.block_until_ready(graph_conv(x, adj, weight, bias))
    ref = jnp.matmul(jnp.matmul(adj, x), weight) + bias
    assert out.shape == (B, N, Dout)
    assert jnp.allclose(out, ref, atol=2e-3, rtol=2e-3)

    # 2) add_self + normalize_embedding epilogue
    out2 = jax.block_until_ready(
        graph_conv(x, adj, weight, bias, add_self=True, normalize_embedding=True))
    y2 = jnp.matmul(adj, x) + x
    y2 = jnp.matmul(y2, weight) + bias
    ref2 = y2 / jnp.maximum(jnp.linalg.norm(y2, axis=-1, keepdims=True), 1e-12)
    assert jnp.allclose(out2, ref2, atol=2e-3, rtol=2e-3)

    # 3) bf16 MXU path (explicit precision tradeoff)
    out3 = jax.block_until_ready(
        graph_conv(x, adj, weight, bias, compute_dtype=jnp.bfloat16))
    assert jnp.allclose(out3, ref, atol=5e-2, rtol=5e-2)

    # 4) Dout > Din -> aggregate-first path (W applied in the epilogue), no bias
    Dout2 = 160
    w2 = jax.random.normal(kw2, (Din, Dout2), dtype=jnp.float32) * 0.1
    out4 = jax.block_until_ready(graph_conv(x, adj, w2, None, add_self=True))
    ref4 = jnp.matmul(jnp.matmul(adj, x) + x, w2)
    assert out4.shape == (B, N, Dout2)
    assert jnp.allclose(out4, ref4, atol=2e-3, rtol=2e-3)

    print("KERNEL_OK")
</pallas_src>

<mosaic_0001>
module attributes {stable_mosaic.version = 11 : i64} {
  func.func @_project_kernel(%arg0: i32, %arg1: i32, %arg2: memref<1x16x32xf32, #tpu.memory_space<vmem>>, %arg3: memref<32x128xf32, #tpu.memory_space<vmem>>, %arg4: memref<1x16x128xf32, #tpu.memory_space<vmem>>) attributes {dimension_semantics = [#tpu.dimension_semantics<parallel>, #tpu.dimension_semantics<parallel>], iteration_bounds = array<i64: 2, 1>, scalar_prefetch = 0 : i64, scratch_operands = 0 : i64, tpu.core_type = #tpu.core_type<tc>, window_params = [{transform_indices = @transform_0, window_bounds = array<i64: 1, 16, 32>}, {pipeline_mode = #tpu.pipeline_mode<synchronous>, transform_indices = @transform_1, window_bounds = array<i64: 32, 128>}, {transform_indices = @transform_2, window_bounds = array<i64: 1, 16, 128>}]} {
    %c0 = arith.constant 0 : index
    %c0_0 = arith.constant 0 : index
    %c0_1 = arith.constant 0 : index
    %0 = vector.load %arg2[%c0, %c0_0, %c0_1] : memref<1x16x32xf32, #tpu.memory_space<vmem>>, vector<1x16x32xf32>
    %1 = vector.shape_cast %0 : vector<1x16x32xf32> to vector<16x32xf32>
    %c0_2 = arith.constant 0 : index
    %c0_3 = arith.constant 0 : index
    %2 = vector.load %arg3[%c0_2, %c0_3] : memref<32x128xf32, #tpu.memory_space<vmem>>, vector<32x128xf32>
    %cst = arith.constant dense<0.000000e+00> : vector<16x128xf32>
    %3 = tpu.matmul %1, %2, %cst {dimension_numbers = #tpu.dot_dimension_numbers<[1], [0], [0], [1], [0, 0, 1, 1], [], []>} : vector<16x32xf32>, vector<32x128xf32>, vector<16x128xf32> -> vector<16x128xf32>
    %c0_4 = arith.constant 0 : index
    %c0_5 = arith.constant 0 : index
    %c0_6 = arith.constant 0 : index
    %4 = vector.load %arg4[%c0_4, %c0_5, %c0_6] : memref<1x16x128xf32, #tpu.memory_space<vmem>>, vector<1x16x128xf32>
    %5 = vector.shape_cast %4 : vector<1x16x128xf32> to vector<16x128xf32>
    %6 = vector.shape_cast %3 : vector<16x128xf32> to vector<1x16x128xf32>
    tpu.vector_store %arg4[%c0_4, %c0_5, %c0_6], %6 {strides = array<i32>} : memref<1x16x128xf32, #tpu.memory_space<vmem>>, vector<1x16x128xf32>,
    return
  }
  func.func @transform_0(%arg0: i32, %arg1: i32) -> (i32, i32, i32) {
    %c0_i32 = arith.constant 0 : i32
    %c0_i32_0 = arith.constant 0 : i32
    return %arg0, %arg1, %c0_i32 : i32, i32, i32
  }
  func.func @transform_1(%arg0: i32, %arg1: i32) -> (i32, i32) {
    %c0_i32 = arith.constant 0 : i32
    %c0_i32_0 = arith.constant 0 : i32
    %c0_i32_1 = arith.constant 0 : i32
    return %c0_i32, %c0_i32_0 : i32, i32
  }
  func.func @transform_2(%arg0: i32, %arg1: i32) -> (i32, i32, i32) {
    %c0_i32 = arith.constant 0 : i32
    %c0_i32_0 = arith.constant 0 : i32
    return %arg0, %arg1, %c0_i32 : i32, i32, i32
  }
}

</mosaic_0001>

<llo_original>
// kernel: tpu_custom_call.1
$region0: #{tpu_custom_call.1}
  #allocation0 [shape = 'u32[]', space=smem, size = 0x4, offset = 0x4, fixed_abs, tag = 'smem constant byte address 0x4 - core index']
  #allocation1 [shape = 'u32[144,128]{1,0:T(1,128)}', space=vmem, size = 0x12000, scoped, tag = 'internal scratch']
  %s0 = inlined_call_operand.hbm [shape: f32[2,16,32], index: 0, kind: input, shape index: {}]
  %s1 = inlined_call_operand.hbm [shape: f32[32,128], index: 1, kind: input, shape index: {}]
  %s2 = inlined_call_operand.hbm [shape: f32[2,16,128], index: 2, kind: output, shape index: {}]
  %s3 = sld [smem:[#allocation0]]
  $region49: #{tpu_custom_call.1} parent=0
    _
  %s5 = ssub.s32 1, %s3
  %s6 = scalar_select 0, %s5, %s3
  $region1: #{tpu_custom_call.1} parent=0
    #allocation2 [shape = 'u8[16384]{0}', space=vmem, size = 0x4000, scoped, tag = 'input window, operand 0']
    #allocation3 [shape = 's32[2]{0}', space=sflag, size = 0x8, scoped, tag = 'scoped memory for tpu_custom_call.1']
    #allocation4 [shape = 's32[2]{0}', space=sflag, size = 0x8, scoped, tag = 'scoped memory for tpu_custom_call.1']
    #allocation5 [shape = 'u8[16384]{0}', space=vmem, size = 0x4000, scoped, tag = 'input window, operand 1, single buffered']
    #allocation6 [shape = 's32[1]{0}', space=sflag, size = 0x4, scoped, tag = 'scoped memory for tpu_custom_call.1']
    #allocation7 [shape = 'u8[16384]{0}', space=vmem, size = 0x4000, scoped, tag = 'output window, operand 0']
    %7 = vsyncpa [#allocation3], 0
    %s8 = scalar_lea.sflag [#allocation3], 1
    %9 = vsyncpa %s8, 0
    %10 = vsyncpa [#allocation6], 0
    %11 = vsyncpa [#allocation4], 0
    %s12 = scalar_lea.sflag [#allocation4], 1
    %13 = vsyncpa %s12, 0
    loop: start=0, step=1, limit=4
    $region2: #{tpu_custom_call.1} parent=1 // loop_pre_header
      _
    $region3: #{tpu_custom_call.1} parent=1 // loop_header
      %s15 = sphi 0, %s19
      %p16 = scmp.ge.s32.totalorder %s15, 4
      %s22 = sphi 0, %s34
      %s23 = sphi 0, %s30
      %s24 = sphi 0, %s22
      %s25 = sphi 0, %s23
      %s26 = sphi 0, %s24
      %s27 = sphi 0, %s25
      %s39 = sphi 0, %s41
      %s42 = sphi 0, %s39
      %s43 = sphi 0, %s42
      %s59 = sphi 0, %s43
      %s63 = sphi 0, %s63
      %s65 = sphi 0, %s63
      %s66 = sphi 0, %s65
      %s80 = sphi 0, %s66
      %s88 = sphi 0, %s90
      %s91 = sphi 0, %s88
      %s92 = sphi 0, %s91
      %s108 = sphi 0, %s92
    $region4: #{tpu_custom_call.1} parent=1 // loop_header_branch
      %18 = sbr.rel (%p16) target = $region8
    $region5: #{tpu_custom_call.1} parent=1 // loop_body
      %s20 = ssub.s32 %s15, 1
      %s21 = ssub.s32 %s15, 2
      %s28 = sadd.s32 1, %s23
      %p29 = scmp.ge.s32.totalorder %s28, 1
      %s30 = scalar_select %p29, 0, %s28
      %s31 = sadd.s32 1, %s22
      %s32 = scalar_select %p29, %s31, %s22
      %p33 = scmp.ge.s32.totalorder %s32, 2
      %s34 = scalar_select %p33, 0, %s32
      %s35 = ssub.s32 %s22, %s34
      %s36 = ssub.s32 %s23, %s30
      %s37 = sor.u32 %s35, %s36
      %p38 = scmp.eq.s32.totalorder %s37, 0
      %s40 = sadd.s32 %s39, 1
      %s41 = scalar_select %p38, %s39, %s40
      %p44 = pneg %p38
      %p45 = scmp.eq.s32.totalorder %s15, 1
      %p46 = por %p44, %p45
      %p47 = scmp.ne.s32.totalorder %s39, %s42
      %p48 = scmp.eq.s32.totalorder %s15, 0
      %p49 = por %p47, %p48
      %p50 = scmp.ne.s32.totalorder %s39, %s42
      %p51 = scmp.eq.s32.totalorder %s20, 1
      %p52 = por %p50, %p51
      %p53 = scmp.ne.s32.totalorder %s42, %s43
      %p54 = scmp.eq.s32.totalorder %s20, 0
      %p55 = por %p53, %p54
      %p56 = scmp.ne.s32.totalorder %s42, %s43
      %p57 = scmp.eq.s32.totalorder %s21, 1
      %p58 = por %p56, %p57
      %p60 = scmp.ne.s32.totalorder %s43, %s59
      %p61 = scmp.eq.s32.totalorder %s21, 0
      %p62 = por %p60, %p61
      %s64 = sadd.s32 %s63, 1
      %p67 = scmp.eq.s32.totalorder %s15, 1
      %p68 = scmp.ne.s32.totalorder %s63, %s65
      %p69 = scmp.eq.s32.totalorder %s15, 0
      %p70 = por %p68, %p69
      %p71 = scmp.ne.s32.totalorder %s63, %s65
      %p72 = scmp.eq.s32.totalorder %s20, 1
      %p73 = por %p71, %p72
      %p74 = scmp.ne.s32.totalorder %s65, %s66
      %p75 = scmp.eq.s32.totalorder %s20, 0
      %p76 = por %p74, %p75
      %p77 = scmp.ne.s32.totalorder %s65, %s66
      %p78 = scmp.eq.s32.totalorder %s21, 1
      %p79 = por %p77, %p78
      %p81 = scmp.ne.s32.totalorder %s66, %s80
      %p82 = scmp.eq.s32.totalorder %s21, 0
      %p83 = por %p81, %p82
      %s84 = ssub.s32 %s22, %s34
      %s85 = ssub.s32 %s23, %s30
      %s86 = sor.u32 %s84, %s85
      %p87 = scmp.eq.s32.totalorder %s86, 0
      %s89 = sadd.s32 %s88, 1
      %s90 = scalar_select %p87, %s88, %s89
      %p93 = pneg %p87
      %p94 = scmp.eq.s32.totalorder %s15, 1
      %p95 = por %p93, %p94
      %p96 = scmp.ne.s32.totalorder %s88, %s91
      %p97 = scmp.eq.s32.totalorder %s15, 0
      %p98 = por %p96, %p97
      %p99 = scmp.ne.s32.totalorder %s88, %s91
      %p100 = scmp.eq.s32.totalorder %s20, 1
      %p101 = por %p99, %p100
      %p102 = scmp.ne.s32.totalorder %s91, %s92
      %p103 = scmp.eq.s32.totalorder %s20, 0
      %p104 = por %p102, %p103
      %p105 = scmp.ne.s32.totalorder %s91, %s92
      %p106 = scmp.eq.s32.totalorder %s21, 1
      %p107 = por %p105, %p106
      %p109 = scmp.ne.s32.totalorder %s92, %s108
      %p110 = scmp.eq.s32.totalorder %s21, 0
      %p111 = por %p109, %p110
      %p112 = scmp.le.s32.totalorder 1, %s15
      %p113 = scmp.lt.s32.totalorder %s15, 3
      %p114 = pnand %p112, %p113
      %p115 = pneg %p114
      // Predicated region
      $region9: #{tpu_custom_call.1} parent=5 // pred_check
        _
      $region10: #{tpu_custom_call.1} parent=5 // pred_check_branch
        %117 = sbr.rel (%p114) target = $region12
      $region11: #{tpu_custom_call.1} parent=5 // pred_region
        %s118 = ssub.s32 %s15, 1
        // Predicated region
        $region13: #{tpu_custom_call.1} parent=11 // pred_check
          %p119 = pneg %p76
        $region14: #{tpu_custom_call.1} parent=11 // pred_check_branch
          %121 = sbr.rel (%p119) target = $region16
        $region15: #{tpu_custom_call.1} parent=11 // pred_region
          %s123 = ssub.s32 512, 512
          %124 = vsyncadd [#allocation6], %s123
          %s125 = sshll.u32 [#allocation5], 4
          %s126 = int_to_ptr.vmem [resolvable:$true] %s125
          %131 = dma.hbm_to_vmem [thread:$0]  %s1, 512, %s126, [#allocation6], 128, 128, 8
        $region16: #{tpu_custom_call.1} parent=11 // pred_fallthru
          _
      $region12: #{tpu_custom_call.1} parent=5 // pred_fallthru
        _
      %p132 = scmp.lt.s32.totalorder %s15, 2
      // Predicated region
      $region17: #{tpu_custom_call.1} parent=5 // pred_check
        %p133 = pneg %p132
      $region18: #{tpu_custom_call.1} parent=5 // pred_check_branch
        %135 = sbr.rel (%p133) target = $region20
      $region19: #{tpu_custom_call.1} parent=5 // pred_region
        // Predicated region
        $region21: #{tpu_custom_call.1} parent=19 // pred_check
          %p136 = pneg %p49
        $region22: #{tpu_custom_call.1} parent=19 // pred_check_branch
          %138 = sbr.rel (%p136) target = $region24
        $region23: #{tpu_custom_call.1} parent=19 // pred_region
          %s139 = sand.u32 %s39, 1
          %s140 = scalar_lea.sflag [#allocation3], %s139
          %s141 = sand.u32 %s39, 1
          %s142 = smul.addr %s141, 16
          %s143 = scalar_lea.vmem [#allocation2], %s142
          %s144 = smul.u32 2, %s23
          %s146 = ssub.s32 256, 256
          %147 = vsyncadd %s140, %s146
          %s148 = smul.addr %s22, 2
          %s149 = sadd.s32 %s144, %s148
          %s150 = smul.addr %s149, 128
          %s151 = scalar_lea.hbm %s0, %s150
          %s152 = sshll.u32 %s143, 4
          %s153 = int_to_ptr.vmem [resolvable:$true] %s152
          %158 = dma.hbm_to_vmem [thread:$0]  %s151, 256, %s153, %s140, 128, 128, 8
        $region24: #{tpu_custom_call.1} parent=19 // pred_fallthru
          _
      $region20: #{tpu_custom_call.1} parent=5 // pred_fallthru
        _
      %p159 = scmp.le.s32.totalorder 1, %s15
      %p160 = scmp.lt.s32.totalorder %s15, 3
      %p161 = pnand %p159, %p160
      %p162 = pneg %p161
      // Predicated region
      $region25: #{tpu_custom_call.1} parent=5 // pred_check
        _
      $region26: #{tpu_custom_call.1} parent=5 // pred_check_branch
        %164 = sbr.rel (%p161) target = $region28
      $region27: #{tpu_custom_call.1} parent=5 // pred_region
        %s165 = ssub.s32 %s15, 1
        %s166 = sand.u32 %s42, 1
        %s167 = scalar_lea.sflag [#allocation3], %s166
        %s168 = sand.u32 %s42, 1
        %s169 = smul.addr %s168, 16
        %s170 = scalar_lea.vmem [#allocation2], %s169
        // Predicated region
        $region29: #{tpu_custom_call.1} parent=27 // pred_check
          %p171 = pneg %p55
        $region30: #{tpu_custom_call.1} parent=27 // pred_check_branch
          %173 = sbr.rel (%p171) target = $region32
        $region31: #{tpu_custom_call.1} parent=27 // pred_region
          %174 = dma.done %s167, 256
        $region32: #{tpu_custom_call.1} parent=27 // pred_fallthru
          _
        // Predicated region
        $region33: #{tpu_custom_call.1} parent=27 // pred_check
          %p175 = pneg %p76
        $region34: #{tpu_custom_call.1} parent=27 // pred_check_branch
          %177 = sbr.rel (%p175) target = $region36
        $region35: #{tpu_custom_call.1} parent=27 // pred_region
          %178 = dma.done [#allocation6], 512
        $region36: #{tpu_custom_call.1} parent=27 // pred_fallthru
          _
        %s179 = sand.u32 %s42, 1
        %s180 = scalar_lea.sflag [#allocation3], %s179
        %s181 = sand.u32 %s42, 1
        %s182 = smul.addr %s181, 16
        %s183 = scalar_lea.vmem [#allocation2], %s182
        %p184 = pneg %p55
        %p185 = pneg %p52
        %p186 = pneg %p76
        %p187 = pneg %p73
        %p188 = pneg %p104
        %p189 = pneg %p101
        %s190 = sand.u32 %s91, 1
        %s191 = scalar_lea.sflag [#allocation4], %s190
        %s192 = sand.u32 %s91, 1
        %s193 = smul.addr %s192, 16
        %s194 = scalar_lea.vmem [#allocation7], %s193
        %s195 = smul.u32 2, %s25
        %s196 = smul.u32 2, %s25
        %v197 = vld [vmem:[%s170] sm:$0xff]
        %v198 = vld [vmem:[%s170 + $0x8] sm:$0xff]
        %v199 = vld [vmem:[#allocation5] sm:$0xff]
        %v200 = vld [vmem:[#allocation5 + $0x8] sm:$0xff]
        %v201 = vld [vmem:[#allocation5 + $0x10] sm:$0xff]
        %v202 = vld [vmem:[#allocation5 + $0x18] sm:$0xff]
        %vm203 = vcmask 261120
        %v205 = vsel %vm203, %v197, 0
        %v208 = vsel %vm203, %v198, 0
        %210 = vmatprep.subr.mxu0 0.0
        %211 = vmatpush1.msra.mxu0 %v199
        %212 = vmatprep.subr.mxu0 0.0
        %213 = vmatpush1.msra.mxu0 %v200
        %214 = vmatprep.subr.mxu0 0.0
        %215 = vmatpush1.msra.mxu0 %v201
        %216 = vmatprep.subr.mxu0 0.0
        %217 = vmatpush1.msra.mxu0 %v202
        %218 = vmatprep.subr.mxu0 0.0
        %219 = vmatpush1.msra.mxu0 0.0
        %220 = vmatprep.subr.mxu0 0.0
        %221 = vmatpush1.msra.mxu0 0.0
        %222 = vmatprep.subr.mxu0 0.0
        %223 = vmatpush1.msra.mxu0 0.0
        %224 = vmatprep.subr.mxu0 0.0
        %225 = vmatpush1.msra.mxu0 0.0
        %226 = vmatprep.subr.mxu0 0.0
        %227 = vmatpush1.msra.mxu0 0.0
        %228 = vmatprep.subr.mxu0 0.0
        %229 = vmatpush1.msra.mxu0 0.0
        %230 = vmatprep.subr.mxu0 0.0
        %231 = vmatpush1.msra.mxu0 0.0
        %232 = vmatprep.subr.mxu0 0.0
        %233 = vmatpush1.msra.mxu0 0.0
        %234 = vmatprep.subr.mxu0 0.0
        %235 = vmatpush1.msra.mxu0 0.0
        %236 = vmatprep.subr.mxu0 0.0
        %237 = vmatpush1.msra.mxu0 0.0
        %238 = vmatprep.subr.mxu0 0.0
        %239 = vmatpush1.msra.mxu0 0.0
        %240 = vmatprep.subr.mxu0 0.0
        %241 = vmatpush1.msra.mxu0 0.0
        %242 = vmatprep.subr.mxu0 0.0
        %243 = vmatpush1.msra.mxu0 0.0
        %244 = vmatprep.subr.mxu0 0.0
        %245 = vmatpush1.msra.mxu0 0.0
        %246 = vmatprep.subr.mxu0 0.0
        %247 = vmatpush1.msra.mxu0 0.0
        %248 = vmatprep.subr.mxu0 0.0
        %249 = vmatpush1.msra.mxu0 0.0
        %250 = vmatprep.subr.mxu0 0.0
        %251 = vmatpush1.msra.mxu0 0.0
        %252 = vmatprep.subr.mxu0 0.0
        %253 = vmatpush1.msra.mxu0 0.0
        %254 = vmatprep.subr.mxu0 0.0
        %255 = vmatpush1.msra.mxu0 0.0
        %256 = vmatprep.subr.mxu0 0.0
        %257 = vmatpush1.msra.mxu0 0.0
        %258 = vmatprep.subr.mxu0 0.0
        %259 = vmatpush1.msra.mxu0 0.0
        %260 = vmatprep.subr.mxu0 0.0
        %261 = vmatpush1.msra.mxu0 0.0
        %262 = vmatprep.subr.mxu0 0.0
        %263 = vmatpush1.msra.mxu0 0.0
        %264 = vmatprep.subr.mxu0 0.0
        %265 = vmatpush1.msra.mxu0 0.0
        %266 = vmatprep.subr.mxu0 0.0
        %267 = vmatpush1.msra.mxu0 0.0
        %268 = vmatprep.subr.mxu0 0.0
        %269 = vmatpush1.msra.mxu0 0.0
        %270 = vmatprep.subr.mxu0 0.0
        %271 = vmatpush1.msra.mxu0 0.0
        %272 = vmatprep.subr.mxu0 0.0
        %273 = vmatpush1.msra.mxu0 0.0
        %274 = vmatprep.mubr.f32.mxu0 0.0
        %275 = vmatmul.mubr.f32.gmra.mrb[0].mxu0 %v205
        %v276 = vpop.f32.mrb[0].mxu0
        %v277 = vadd.f32 0.0, %v276
        %v278 = vpop.f32.mrb[0].mxu0
        %279 = vmatprep.mubr.f32.mxu0 0.0
        %280 = vmatmul.mubr.f32.gmra.mrb[0].mxu0 %v208
        %v281 = vpop.f32.mrb[0].mxu0
        %v282 = vadd.f32 0.0, %v281
        %v283 = vpop.f32.mrb[0].mxu0
        %284 = vdwg.mxu0
        %285 = vst [vmem:[%s194] sm:$0xff] %v277
        %286 = vst [vmem:[%s194 + $0x8] sm:$0xff] %v282
        %s287 = sand.u32 %s91, 1
        %s288 = scalar_lea.sflag [#allocation4], %s287
        %s289 = sand.u32 %s91, 1
        %s290 = smul.addr %s289, 16
        %s291 = scalar_lea.vmem [#allocation7], %s290
        // Predicated region
        $region37: #{tpu_custom_call.1} parent=27 // pred_check
          %p292 = pneg %p101
        $region38: #{tpu_custom_call.1} parent=27 // pred_check_branch
          %294 = sbr.rel (%p292) target = $region40
        $region39: #{tpu_custom_call.1} parent=27 // pred_region
          %s295 = smul.u32 2, %s25
          %s297 = ssub.s32 256, 256
          %298 = vsyncadd %s288, %s297
          %s299 = smul.addr %s24, 2
          %s300 = sadd.s32 %s295, %s299
          %s301 = smul.addr %s300, 128
          %s302 = scalar_lea.hbm %s2, %s301
          %s303 = sshll.u32 %s291, 4
          %s304 = int_to_ptr.vmem [resolvable:$true] %s303
          %309 = dma.vmem_to_hbm [thread:$0]  %s304, 256, %s302, %s288, 128, 128, 8
        $region40: #{tpu_custom_call.1} parent=27 // pred_fallthru
          _
      $region28: #{tpu_custom_call.1} parent=5 // pred_fallthru
        _
      %p310 = scmp.le.s32.totalorder 2, %s15
      // Predicated region
      $region41: #{tpu_custom_call.1} parent=5 // pred_check
        %p311 = pneg %p310
      $region42: #{tpu_custom_call.1} parent=5 // pred_check_branch
        %313 = sbr.rel (%p311) target = $region44
      $region43: #{tpu_custom_call.1} parent=5 // pred_region
        %s314 = ssub.s32 %s15, 2
        // Predicated region
        $region45: #{tpu_custom_call.1} parent=43 // pred_check
          %p315 = pneg %p107
        $region46: #{tpu_custom_call.1} parent=43 // pred_check_branch
          %317 = sbr.rel (%p315) target = $region48
        $region47: #{tpu_custom_call.1} parent=43 // pred_region
          %s318 = sand.u32 %s92, 1
          %s319 = scalar_lea.sflag [#allocation4], %s318
          %s320 = sand.u32 %s92, 1
          %s321 = smul.addr %s320, 16
          %s322 = scalar_lea.vmem [#allocation7], %s321
          %323 = dma.done %s319, 256
        $region48: #{tpu_custom_call.1} parent=43 // pred_fallthru
          _
      $region44: #{tpu_custom_call.1} parent=5 // pred_fallthru
        _
    $region6: #{tpu_custom_call.1} parent=1 // loop_footer
      %s19 = sadd.s32 1, %s15
    $region7: #{tpu_custom_call.1} parent=1 // loop_footer_branch
      %14 = sbr.rel target = $region3
    $region8: #{tpu_custom_call.1} parent=1 // loop_exit
      _
    %324 = vsyncpa [#allocation3], 1
    %s325 = scalar_lea.sflag [#allocation3], 1
    %326 = vsyncpa %s325, 1
    %327 = vsyncpa [#allocation6], 1
    %328 = vsyncpa [#allocation4], 1
    %s329 = scalar_lea.sflag [#allocation4], 1
    %330 = vsyncpa %s329, 1

</llo_original>
